<compile_context>
chip_gen: v5e
topology: v5e:2x2
jax: 0.10.0
libtpu: 0.0.40
codegen_flags: <defaults>
</compile_context>

<pallas_src>
import functools
import math

import jax
import jax.numpy as jnp
from jax import lax
from jax.experimental import pallas as pl
from jax.experimental.pallas import tpu as pltpu

EPS = 1e-12            # F.normalize default eps
MAX_TB = 128           # max batch tile (MXU rows)
MAX_TO = 1024          # max class tile (lane axis)


def _round_up(x, m):
    return (x + m - 1) // m * m


def _l2_normalize(x):
    # F.normalize: x / max(||x||, eps) == x * rsqrt(max(||x||^2, eps^2))
    sq = jnp.sum(x * x, axis=-1, keepdims=True)
    return x * lax.rsqrt(jnp.maximum(sq, EPS * EPS))


def prepare_arc_margin_weight(weight, *, d_pad, o_pad):
    """One-time weight prep: normalize rows, transpose to (D, OUT), pad, bf16.

    Cache the result outside the per-step path (inference) or fold it into the
    weight update (training); the kernel only ever sees this ready tensor.
    """
    out_features, d = weight.shape
    wn = _l2_normalize(weight.astype(jnp.float32))           # F.normalize(weight)
    wn_t = jnp.transpose(wn, (1, 0))                          # (D, OUT): classes on lanes
    wn_t = jnp.pad(wn_t, ((0, d_pad - d), (0, o_pad - out_features)))
    return wn_t.astype(jnp.bfloat16)                          # halve weight HBM bytes


def _arc_margin_kernel(f_ref, lbl_ref, w_ref, o_ref, *,
                       s, cos_m, sin_m, th, mm, easy_margin, tile_classes):
    # f_ref: (TB, Dp) bf16 pre-normalized | lbl_ref: (TB, 1) int32
    # w_ref: (Dp, TO) bf16 pre-normalized | o_ref: (TB, TO) f32
    cosine = jnp.dot(f_ref[...], w_ref[...], preferred_element_type=jnp.float32)
    sine = jnp.sqrt(jnp.clip(1.0 - cosine * cosine, 0.0, 1.0))
    phi = cosine * cos_m - sine * sin_m
    if easy_margin:
        phi = jnp.where(cosine > 0.0, phi, cosine)
    else:
        phi = jnp.where(cosine > th, phi, cosine - mm)
    # one_hot(label) restricted to the classes covered by this (outer-axis) tile.
    col = pl.program_id(0) * tile_classes + lax.broadcasted_iota(
        jnp.int32, cosine.shape, 1)
    one_hot = col == lbl_ref[...]                             # (TB,1) broadcast over lanes
    o_ref[...] = (jnp.where(one_hot, phi, cosine) * s).astype(o_ref.dtype)


def arc_margin_product(features, labels, weight, *, s=32.0, m=0.5, easy_margin=False):
    """features: (B, in_features) f32; labels: (B,) int; weight: (out_features, in_features) f32."""
    B, D = features.shape
    out_features = weight.shape[0]
    assert weight.shape == (out_features, D)
    assert labels.shape == (B,)

    # ---- adaptive tiles: don't blow up small batches / small class counts ----
    tb = min(MAX_TB, _round_up(B, 16))
    to = min(MAX_TO, _round_up(out_features, 128))
    b_pad = _round_up(B, tb)
    d_pad = _round_up(D, 128)
    o_pad = _round_up(out_features, to)

    # ---- one-time weight prep (hoisted; cacheable by the caller) ----
    wn_t = prepare_arc_margin_weight(weight, d_pad=d_pad, o_pad=o_pad)

    # ---- feature normalization hoisted out of the kernel; bf16 MXU operand ----
    fn = _l2_normalize(features.astype(jnp.float32))
    f_pad = jnp.pad(fn, ((0, b_pad - B), (0, d_pad - D))).astype(jnp.bfloat16)
    lbl = jnp.pad(labels.astype(jnp.int32), (0, b_pad - B)).reshape(b_pad, 1)

    # Class tile OUTER (slow), batch tile INNER (fast): weight block index depends
    # only on the outer axis -> each weight tile is fetched from HBM exactly once.
    grid = (o_pad // to, b_pad // tb)
    n_class_tiles = o_pad // to

    # Derived VMEM need (double-buffered blocks); only raise the scoped limit when
    # it would exceed the smallest (v5e, 16 MiB) default.
    blk_bytes = 2 * (d_pad * to * 2          # weight block (bf16)
                     + tb * d_pad * 2        # feature block (bf16)
                     + tb * to * 4           # output block (f32)
                     + tb * 128 * 4)         # label block (i32, lane-padded)
    vmem_limit = None
    if blk_bytes > 12 * 1024 * 1024:
        vmem_limit = min(_round_up(blk_bytes * 3 // 2, 1 << 20), 32 * 1024 * 1024)

    cost = pl.CostEstimate(
        flops=2 * b_pad * d_pad * o_pad + 8 * b_pad * o_pad,
        transcendentals=b_pad * o_pad,                        # sqrt per output element
        bytes_accessed=(wn_t.size * 2                         # weight streamed once
                        + n_class_tiles * b_pad * d_pad * 2   # features per class tile
                        + n_class_tiles * b_pad * 4           # labels per class tile
                        + b_pad * o_pad * 4),                 # output
    )

    kernel = functools.partial(
        _arc_margin_kernel,
        s=float(s), cos_m=math.cos(m), sin_m=math.sin(m),
        th=math.cos(math.pi - m), mm=math.sin(math.pi - m) * m,
        easy_margin=easy_margin, tile_classes=to)

    out = pl.pallas_call(
        kernel,
        out_shape=jax.ShapeDtypeStruct((b_pad, o_pad), jnp.float32),
        grid=grid,
        in_specs=[
            pl.BlockSpec((tb, d_pad), lambda j, i: (i, 0)),   # features (re-streamed, tiny)
            pl.BlockSpec((tb, 1), lambda j, i: (i, 0)),       # labels
            pl.BlockSpec((d_pad, to), lambda j, i: (0, j)),   # weights (once per class tile)
        ],
        out_specs=pl.BlockSpec((tb, to), lambda j, i: (i, j)),
        compiler_params=pltpu.CompilerParams(
            dimension_semantics=("parallel", "parallel"),
            vmem_limit_bytes=vmem_limit),
        cost_estimate=cost,
    )(f_pad, lbl, wn_t)

    return out[:B, :out_features]


if __name__ == "__main__":
    # Small, module-consistent shapes (linear_out -> 32, num_classes 11014 -> 16).
    B = 8
    IN_FEATURES = 32
    OUT_FEATURES = 16
    S = 32.0
    M = 0.5

    key = jax.random.PRNGKey(0)
    kf, kw, kl = jax.random.split(key, 3)

    features = jax.random.normal(kf, (B, IN_FEATURES), dtype=jnp.float32)
    # nn.init.xavier_uniform_: U(-a, a), a = sqrt(6 / (fan_in + fan_out))
    bound = math.sqrt(6.0 / (IN_FEATURES + OUT_FEATURES))
    weight = jax.random.uniform(kw, (OUT_FEATURES, IN_FEATURES), dtype=jnp.float32,
                                minval=-bound, maxval=bound)
    labels = jax.random.randint(kl, (B,), 0, OUT_FEATURES, dtype=jnp.int32)

    out = arc_margin_product(features, labels, weight, s=S, m=M, easy_margin=False)
    out = jax.block_until_ready(out)

    # Pure-JAX f32 reference of ArcMarginProduct.forward.
    fn = features / jnp.maximum(jnp.linalg.norm(features, axis=-1, keepdims=True), EPS)
    wn = weight / jnp.maximum(jnp.linalg.norm(weight, axis=-1, keepdims=True), EPS)
    cos = fn @ wn.T
    sin = jnp.sqrt(jnp.clip(1.0 - cos * cos, 0.0, 1.0))
    phi = cos * math.cos(M) - sin * math.sin(M)
    phi = jnp.where(cos > math.cos(math.pi - M), phi, cos - math.sin(math.pi - M) * M)
    one_hot = jax.nn.one_hot(labels, OUT_FEATURES, dtype=jnp.float32)
    ref = (one_hot * phi + (1.0 - one_hot) * cos) * S

    assert out.shape == (B, OUT_FEATURES)
    max_err = float(jnp.max(jnp.abs(out - ref)))
    # bf16 MXU operands -> loosened tolerance vs the f32 reference, scaled by s.
    assert max_err < 2e-2 * S, max_err

    print("KERNEL_OK")
</pallas_src>

<mosaic_0001>
module attributes {stable_mosaic.version = 11 : i64} {
  func.func @_arc_margin_kernel(%arg0: i32, %arg1: i32, %arg2: memref<16x128xbf16, #tpu.memory_space<vmem>>, %arg3: memref<16x1xi32, #tpu.memory_space<vmem>>, %arg4: memref<128x128xbf16, #tpu.memory_space<vmem>>, %arg5: memref<16x128xf32, #tpu.memory_space<vmem>>) attributes {dimension_semantics = [#tpu.dimension_semantics<parallel>, #tpu.dimension_semantics<parallel>], iteration_bounds = array<i64: 1, 1>, scalar_prefetch = 0 : i64, scratch_operands = 0 : i64, tpu.core_type = #tpu.core_type<tc>, window_params = [{transform_indices = @transform_0, window_bounds = array<i64: 16, 128>}, {transform_indices = @transform_1, window_bounds = array<i64: 16, 1>}, {transform_indices = @transform_2, window_bounds = array<i64: 128, 128>}, {transform_indices = @transform_3, window_bounds = array<i64: 16, 128>}]} {
    %c0 = arith.constant 0 : index
    %c0_0 = arith.constant 0 : index
    %0 = vector.load %arg2[%c0, %c0_0] : memref<16x128xbf16, #tpu.memory_space<vmem>>, vector<16x128xbf16>
    %c0_1 = arith.constant 0 : index
    %c0_2 = arith.constant 0 : index
    %1 = vector.load %arg4[%c0_1, %c0_2] : memref<128x128xbf16, #tpu.memory_space<vmem>>, vector<128x128xbf16>
    %cst = arith.constant dense<0.000000e+00> : vector<16x128xf32>
    %2 = tpu.matmul %0, %1, %cst {dimension_numbers = #tpu.dot_dimension_numbers<[1], [0], [0], [1], [0, 0, 1, 1], [], []>} : vector<16x128xbf16>, vector<128x128xbf16>, vector<16x128xf32> -> vector<16x128xf32>
    %3 = arith.mulf %2, %2 : vector<16x128xf32>
    %cst_3 = arith.constant 1.000000e+00 : f32
    %4 = vector.broadcast %cst_3 : f32 to vector<16x128xf32>
    %5 = arith.subf %4, %3 : vector<16x128xf32>
    %cst_4 = arith.constant 0.000000e+00 : f32
    %cst_5 = arith.constant 1.000000e+00 : f32
    %6 = vector.broadcast %cst_4 : f32 to vector<16x128xf32>
    %7 = arith.maximumf %6, %5 : vector<16x128xf32>
    %8 = vector.broadcast %cst_5 : f32 to vector<16x128xf32>
    %9 = arith.minimumf %8, %7 : vector<16x128xf32>
    %10 = math.sqrt %9 : vector<16x128xf32>
    %cst_6 = arith.constant 0.87758255 : f32
    %11 = vector.broadcast %cst_6 : f32 to vector<16x128xf32>
    %12 = arith.mulf %2, %11 : vector<16x128xf32>
    %cst_7 = arith.constant 0.47942555 : f32
    %13 = vector.broadcast %cst_7 : f32 to vector<16x128xf32>
    %14 = arith.mulf %10, %13 : vector<16x128xf32>
    %15 = arith.subf %12, %14 : vector<16x128xf32>
    %cst_8 = arith.constant -0.87758255 : f32
    %16 = vector.broadcast %cst_8 : f32 to vector<16x128xf32>
    %17 = arith.cmpf ogt, %2, %16 : vector<16x128xf32>
    %cst_9 = arith.constant 0.239712775 : f32
    %18 = vector.broadcast %cst_9 : f32 to vector<16x128xf32>
    %19 = arith.subf %2, %18 : vector<16x128xf32>
    %20 = arith.select %17, %15, %19 : vector<16x128xi1>, vector<16x128xf32>
    %c128_i32 = arith.constant 128 : i32
    %21 = arith.muli %arg0, %c128_i32 : i32
    %22 = tpu.iota {dimensions = array<i32: 1>} : vector<16x128xi32>
    %23 = vector.broadcast %21 : i32 to vector<16x128xi32>
    %24 = arith.addi %23, %22 : vector<16x128xi32>
    %c0_10 = arith.constant 0 : index
    %c0_11 = arith.constant 0 : index
    %25 = vector.load %arg3[%c0_10, %c0_11] : memref<16x1xi32, #tpu.memory_space<vmem>>, vector<16x1xi32>
    %26 = vector.broadcast %25 : vector<16x1xi32> to vector<16x128xi32>
    %27 = arith.cmpi eq, %24, %26 : vector<16x128xi32>
    %28 = arith.select %27, %20, %2 : vector<16x128xi1>, vector<16x128xf32>
    %cst_12 = arith.constant 3.200000e+01 : f32
    %29 = vector.broadcast %cst_12 : f32 to vector<16x128xf32>
    %30 = arith.mulf %28, %29 : vector<16x128xf32>
    %c0_13 = arith.constant 0 : index
    %c0_14 = arith.constant 0 : index
    %31 = vector.load %arg5[%c0_13, %c0_14] : memref<16x128xf32, #tpu.memory_space<vmem>>, vector<16x128xf32>
    tpu.vector_store %arg5[%c0_13, %c0_14], %30 {strides = array<i32>} : memref<16x128xf32, #tpu.memory_space<vmem>>, vector<16x128xf32>,
    return
  }
  func.func @transform_0(%arg0: i32, %arg1: i32) -> (i32, i32) {
    %c0_i32 = arith.constant 0 : i32
    %c0_i32_0 = arith.constant 0 : i32
    return %arg1, %c0_i32 : i32, i32
  }
  func.func @transform_1(%arg0: i32, %arg1: i32) -> (i32, i32) {
    %c0_i32 = arith.constant 0 : i32
    %c0_i32_0 = arith.constant 0 : i32
    return %arg1, %c0_i32 : i32, i32
  }
  func.func @transform_2(%arg0: i32, %arg1: i32) -> (i32, i32) {
    %c0_i32 = arith.constant 0 : i32
    %c0_i32_0 = arith.constant 0 : i32
    return %c0_i32, %arg0 : i32, i32
  }
  func.func @transform_3(%arg0: i32, %arg1: i32) -> (i32, i32) {
    %c0_i32 = arith.constant 0 : i32
    return %arg1, %arg0 : i32, i32
  }
}

</mosaic_0001>

<llo_original>
// kernel: tpu_custom_call.1
$region0: #{tpu_custom_call.1}
  #allocation0 [shape = 'u32[]', space=smem, size = 0x4, offset = 0x4, fixed_abs, tag = 'smem constant byte address 0x4 - core index']
  #allocation1 [shape = 'u32[72,128]{1,0:T(1,128)}', space=vmem, size = 0x9000, scoped, tag = 'internal scratch']
  %s0 = inlined_call_operand.vmem [shape: bf16[16,128], index: 0, kind: input, shape index: {}]
  %s1 = inlined_call_operand.vmem [shape: s32[16,1], index: 1, kind: input, shape index: {}]
  %s2 = inlined_call_operand.hbm [shape: bf16[128,128], index: 2, kind: input, shape index: {}]
  %s3 = inlined_call_operand.hbm [shape: f32[16,128], index: 3, kind: output, shape index: {}]
  %s4 = sld [smem:[#allocation0]]
  $region26: #{tpu_custom_call.1} parent=0
    _
  %s6 = ssub.s32 1, %s4
  %s7 = scalar_select 0, %s6, %s4
  $region1: #{tpu_custom_call.1} parent=0
    #allocation2 [shape = 'u8[32768]{0}', space=vmem, size = 0x8000, scoped, tag = 'input window, operand 2, single buffered']
    #allocation3 [shape = 's32[1]{0}', space=sflag, size = 0x4, scoped, tag = 'scoped memory for tpu_custom_call.1']
    #allocation4 [shape = 's32[1]{0}', space=sflag, size = 0x4, scoped, tag = 'scoped memory for tpu_custom_call.1']
    #allocation5 [shape = 'u8[8192]{0}', space=vmem, size = 0x2000, scoped, tag = 'output window, operand 0, single buffered']
    %8 = vsyncpa [#allocation3], 0
    %9 = vsyncpa [#allocation4], 0
    // Predicated region
    $region2: #{tpu_custom_call.1} parent=1 // pred_check
      _
    $region3: #{tpu_custom_call.1} parent=1 // pred_check_branch
      %11 = sbr.rel (0) target = $region5
    $region4: #{tpu_custom_call.1} parent=1 // pred_region
      _
    $region5: #{tpu_custom_call.1} parent=1 // pred_fallthru
      _
    // Predicated region
    $region6: #{tpu_custom_call.1} parent=1 // pred_check
      _
    $region7: #{tpu_custom_call.1} parent=1 // pred_check_branch
      %13 = sbr.rel (0) target = $region9
    $region8: #{tpu_custom_call.1} parent=1 // pred_region
      _
    $region9: #{tpu_custom_call.1} parent=1 // pred_fallthru
      _
    // Predicated region
    $region10: #{tpu_custom_call.1} parent=1 // pred_check
      _
    $region11: #{tpu_custom_call.1} parent=1 // pred_check_branch
      %15 = sbr.rel (0) target = $region13
    $region12: #{tpu_custom_call.1} parent=1 // pred_region
      %17 = vsyncadd [#allocation3], 0
      %s18 = sshll.u32 %s2, 4
      %s19 = int_to_ptr.hbm [resolvable:$true] %s18
      %s20 = sshll.u32 [#allocation2], 4
      %s21 = int_to_ptr.vmem [resolvable:$true] %s20
      %26 = dma.hbm_to_vmem [thread:$0]  %s19, 1024, %s21, [#allocation3], 64, 64, 4
    $region13: #{tpu_custom_call.1} parent=1 // pred_fallthru
      _
    // Predicated region
    $region14: #{tpu_custom_call.1} parent=1 // pred_check
      _
    $region15: #{tpu_custom_call.1} parent=1 // pred_check_branch
      %28 = sbr.rel (0) target = $region17
    $region16: #{tpu_custom_call.1} parent=1 // pred_region
      %30 = dma.done [#allocation3], 1024
    $region17: #{tpu_custom_call.1} parent=1 // pred_fallthru
      _
    %v31 = vld [vmem:[%s0] sm:$0xf]
    %v32 = vld [vmem:[%s0 + $0x4] sm:$0xf]
    %v33 = vld [vmem:[#allocation2] sm:$0xf]
    %v34 = vld [vmem:[#allocation2 + $0x4] sm:$0xf]
    %v35 = vld [vmem:[#allocation2 + $0x8] sm:$0xf]
    %v36 = vld [vmem:[#allocation2 + $0xc] sm:$0xf]
    %v37 = vld [vmem:[#allocation2 + $0x10] sm:$0xf]
    %v38 = vld [vmem:[#allocation2 + $0x14] sm:$0xf]
    %v39 = vld [vmem:[#allocation2 + $0x18] sm:$0xf]
    %v40 = vld [vmem:[#allocation2 + $0x1c] sm:$0xf]
    %v41 = vld [vmem:[#allocation2 + $0x20] sm:$0xf]
    %v42 = vld [vmem:[#allocation2 + $0x24] sm:$0xf]
    %v43 = vld [vmem:[#allocation2 + $0x28] sm:$0xf]
    %v44 = vld [vmem:[#allocation2 + $0x2c] sm:$0xf]
    %v45 = vld [vmem:[#allocation2 + $0x30] sm:$0xf]
    %v46 = vld [vmem:[#allocation2 + $0x34] sm:$0xf]
    %v47 = vld [vmem:[#allocation2 + $0x38] sm:$0xf]
    %v48 = vld [vmem:[#allocation2 + $0x3c] sm:$0xf]
    %v51 = vunpack.c.l.b16 %v31
    %v52 = vunpack.c.l.b16 %v32
    %v53 = vpack.c.b16 %v52, %v51
    %v71 = vunpack.c.l.b16 %v33
    %v72 = vunpack.c.l.b16 %v34
    %v73 = vunpack.c.l.b16 %v35
    %v74 = vunpack.c.l.b16 %v36
    %v75 = vunpack.c.l.b16 %v37
    %v76 = vunpack.c.l.b16 %v38
    %v77 = vunpack.c.l.b16 %v39
    %v78 = vunpack.c.l.b16 %v40
    %v79 = vunpack.c.l.b16 %v41
    %v80 = vunpack.c.l.b16 %v42
    %v81 = vunpack.c.l.b16 %v43
    %v82 = vunpack.c.l.b16 %v44
    %v83 = vunpack.c.l.b16 %v45
    %v84 = vunpack.c.l.b16 %v46
    %v85 = vunpack.c.l.b16 %v47
    %v86 = vunpack.c.l.b16 %v48
    %v87 = vpack.c.b16 %v72, %v71
    %v88 = vpack.c.b16 %v74, %v73
    %v89 = vpack.c.b16 %v76, %v75
    %v90 = vpack.c.b16 %v78, %v77
    %v91 = vpack.c.b16 %v80, %v79
    %v92 = vpack.c.b16 %v82, %v81
    %v93 = vpack.c.b16 %v84, %v83
    %v94 = vpack.c.b16 %v86, %v85
    %103 = vmatpush.bf16.msra.mxu0 %v94
    %104 = vmatpush.bf16.msra.mxu0 %v93
    %105 = vmatpush.bf16.msra.mxu0 %v92
    %106 = vmatpush.bf16.msra.mxu0 %v91
    %107 = vmatpush.bf16.msra.mxu0 %v90
    %108 = vmatpush.bf16.msra.mxu0 %v89
    %109 = vmatpush.bf16.msra.mxu0 %v88
    %110 = vmatpush.bf16.msra.mxu0 %v87
    %111 = vmatmul.bf16.gmra.mxu0 %v53
    %v112 = vpop.f32.mrf.mxu0
    %v113 = vadd.f32 0.0, %v112
    %v114 = vpop.f32.mrf.mxu0
    %v115 = vadd.f32 0.0, %v114
    %116 = vdwg.mxu0
    %v117 = vmul.f32 %v113, %v113
    %v118 = vmul.f32 %v115, %v115
    %v119 = vsub.f32 1.0, %v117
    %v120 = vsub.f32 1.0, %v118
    %v121 = vmax.f32 %v119, 0.0
    %v122 = vmax.f32 %v120, 0.0
    %v123 = vmin.f32 %v121, 1.0
    %v124 = vmin.f32 %v122, 1.0
    %v125 = vrsqrt.pop %v123
    %v126 = vmul.f32 %v125, %v123
    %v127 = vmul.f32 %v126, %v125
    %v128 = vmul.f32 0.5, %v127
    %v129 = vsub.f32 1.5, %v128
    %v130 = vmul.f32 %v125, %v129
    %v131 = vmul.f32 %v123, %v130
    %vm132 = vcmp.eq.f32.partialorder %v123, inf
    %v133 = vsel %vm132, %v123, %v131
    %vm134 = vcmp.eq.f32.partialorder %v123, 0.0
    %v135 = vand.u32 %v123, 2147483648
    %v136 = vsel %vm134, %v135, %v133
    %v137 = vrsqrt.pop %v124
    %v138 = vmul.f32 %v137, %v124
    %v139 = vmul.f32 %v138, %v137
    %v140 = vmul.f32 0.5, %v139
    %v141 = vsub.f32 1.5, %v140
    %v142 = vmul.f32 %v137, %v141
    %v143 = vmul.f32 %v124, %v142
    %vm144 = vcmp.eq.f32.partialorder %v124, inf
    %v145 = vsel %vm144, %v124, %v143
    %vm146 = vcmp.eq.f32.partialorder %v124, 0.0
    %v147 = vand.u32 %v124, 2147483648
    %v148 = vsel %vm146, %v147, %v145
    %v149 = vmul.f32 %v113, 0.87758255
    %v150 = vmul.f32 %v115, 0.87758255
    %v151 = vmul.f32 %v136, 0.47942555
    %v152 = vmul.f32 %v148, 0.47942555
    %v153 = vsub.f32 %v149, %v151
    %v154 = vsub.f32 %v150, %v152
    %vm155 = vcmp.gt.f32.partialorder %v113, -0.87758255
    %vm156 = vcmp.gt.f32.partialorder %v115, -0.87758255
    %v157 = vsub.f32 %v113, 0.23971277
    %v158 = vsub.f32 %v115, 0.23971277
    %v159 = vsel %vm155, %v153, %v157
    %v160 = vsel %vm156, %v154, %v158
    %s161 = smul.u32 0, 128
    %v162 = vlaneseq
    %v163 = vand.u32 %v162, 127
    %v164 = vstv %s161
    %v165 = vadd.s32 %v164, %v163
    %v166 = vld [vmem:[%s1] sm:$0xff]
    %v167 = vld [vmem:[%s1 + $0x8] sm:$0xff]
    %168 = vset.pattern.permute.xlu0 0
    %169 = vperm.xlu0 %168, %v166
    %v170 = vpop.permute.xlu0 %169
    %171 = vset.pattern.permute.xlu0 0
    %172 = vperm.xlu0 %171, %v167
    %v173 = vpop.permute.xlu0 %172
    %vm174 = vcmp.eq.s32.totalorder %v165, %v170
    %vm175 = vcmp.eq.s32.totalorder %v165, %v173
    %v176 = vsel %vm174, %v159, %v113
    %v177 = vsel %vm175, %v160, %v115
    %v178 = vmul.f32 %v176, 32.0
    %v179 = vmul.f32 %v177, 32.0
    %180 = vst [vmem:[#allocation5] sm:$0xff] %v178
    %181 = vst [vmem:[#allocation5 + $0x8] sm:$0xff] %v179
    // Predicated region
    $region18: #{tpu_custom_call.1} parent=1 // pred_check
      _
    $region19: #{tpu_custom_call.1} parent=1 // pred_check_branch
      %183 = sbr.rel (0) target = $region21
    $region20: #{tpu_custom_call.1} parent=1 // pred_region
      %185 = vsyncadd [#allocation4], 0
      %s186 = sshll.u32 [#allocation5], 4
      %s187 = int_to_ptr.vmem [resolvable:$true] %s186
      %s188 = sshll.u32 %s3, 4
      %s189 = int_to_ptr.hbm [resolvable:$true] %s188
      %194 = dma.vmem_to_hbm [thread:$0]  %s187, 256, %s189, [#allocation4], 128, 128, 8
    $region21: #{tpu_custom_call.1} parent=1 // pred_fallthru
      _
    // Predicated region
    $region22: #{tpu_custom_call.1} parent=1 // pred_check
      _
    $region23: #{tpu_custom_call.1} parent=1 // pred_check_branch
      %196 = sbr.rel (0) target = $region25
    $region24: #{tpu_custom_call.1} parent=1 // pred_region
      %198 = dma.done [#allocation4], 256
    $region25: #{tpu_custom_call.1} parent=1 // pred_fallthru
      _
    %199 = vsyncpa [#allocation3], 1
    %200 = vsyncpa [#allocation4], 1

</llo_original>
